<compile_context>
chip_gen: v7x
topology: tpu7x:2x2x1
jax: 0.10.0
libtpu: 0.0.40
codegen_flags: <defaults>
</compile_context>

<pallas_src>
import jax
import jax.numpy as jnp
from jax.experimental import pallas as pl
from jax.experimental.pallas import tpu as pltpu


def mlp_kernel(x_ref, w1_ref, b1_ref, w2_ref, b2_ref, o_ref):
    # x_ref : (1, TN)  batch tile, batch on the lane axis
    # w1_ref: (H, 1)   hidden weights, H on the sublane axis
    # b1_ref: (H, 1)   hidden bias
    # w2_ref: (H, 1)   output weights (transposed torch (1,H))
    # b2_ref: (1,)     output bias, SMEM scalar
    x = x_ref[...]                                   # (1, TN)
    w1 = w1_ref[...]                                 # (H, 1)
    b1 = b1_ref[...]                                 # (H, 1)
    w2 = w2_ref[...]                                 # (H, 1)

    # hidden = relu(x * w1 + b1): pure VPU broadcast mul/add + max  -> (H, TN)
    h = jnp.maximum(w1 * x + b1, 0.0)

    # out = sum_H(hidden * w2) + b2: sublane (XLU) reduction        -> (1, TN)
    y = jnp.sum(h * w2, axis=0, keepdims=True) + b2_ref[0]
    o_ref[...] = y.astype(o_ref.dtype)


def red_neuronal_forward(x, w1, b1, w2, b2, *, max_tile_n=8192):
    """Forward pass of RedNeuronal.

    x : (N, 1)    input
    w1: (H, 1)    torch hidden.weight layout (out=H, in=1)
    b1: (H,)      torch hidden.bias
    w2: (1, H)    torch output.weight layout (out=1, in=H)
    b2: (1,)      torch output.bias
    returns (N, 1) float32
    """
    N = x.shape[0]
    H = w1.shape[0]
    lanes = 128

    # Lane-dense batch layout: pad N up to a multiple of the lane tile.
    tile_n = min(((N + lanes - 1) // lanes) * lanes, max_tile_n)
    n_pad = ((N + tile_n - 1) // tile_n) * tile_n

    x_wide = jnp.zeros((1, n_pad), jnp.float32)
    x_wide = x_wide.at[0, :N].set(x.reshape(-1).astype(jnp.float32))

    w1c = w1.reshape(H, 1).astype(jnp.float32)        # (H, 1)
    b1c = b1.reshape(H, 1).astype(jnp.float32)        # (H, 1)
    w2c = w2.reshape(1, H).T.astype(jnp.float32)      # (H, 1)
    b2s = b2.reshape(1).astype(jnp.float32)           # (1,) SMEM scalar

    grid = (n_pad // tile_n,)
    y_wide = pl.pallas_call(
        mlp_kernel,
        out_shape=jax.ShapeDtypeStruct((1, n_pad), jnp.float32),
        grid_spec=pl.GridSpec(
            grid=grid,
            in_specs=[
                pl.BlockSpec((1, tile_n), lambda i: (0, i)),          # x tile
                pl.BlockSpec((H, 1), lambda i: (0, 0)),               # w1
                pl.BlockSpec((H, 1), lambda i: (0, 0)),               # b1
                pl.BlockSpec((H, 1), lambda i: (0, 0)),               # w2
                pl.BlockSpec(memory_space=pltpu.MemorySpace.SMEM),    # b2 scalar
            ],
            out_specs=pl.BlockSpec((1, tile_n), lambda i: (0, i)),
        ),
        compiler_params=pltpu.CompilerParams(
            dimension_semantics=("parallel",)),
    )(x_wide, w1c, b1c, w2c, b2s)

    return y_wide[0, :N].reshape(N, 1)


if __name__ == "__main__":
    hidden_neurons = 32
    N = 8

    key = jax.random.PRNGKey(0)
    kx, k1, k2, k3, k4 = jax.random.split(key, 5)

    # Parameters in native torch nn.Linear layouts.
    x = jax.random.normal(kx, (N, 1), dtype=jnp.float32)
    w1 = jax.random.normal(k1, (hidden_neurons, 1), dtype=jnp.float32) * 0.5   # hidden.weight
    b1 = jax.random.normal(k2, (hidden_neurons,), dtype=jnp.float32) * 0.1     # hidden.bias
    w2 = jax.random.normal(k3, (1, hidden_neurons), dtype=jnp.float32) * 0.5   # output.weight
    b2 = jax.random.normal(k4, (1,), dtype=jnp.float32) * 0.1                  # output.bias

    out = jax.block_until_ready(red_neuronal_forward(x, w1, b1, w2, b2))

    # Pure-JAX reference matching torch semantics: relu(x @ W1.T + b1) @ W2.T + b2
    ref = jnp.maximum(x @ w1.T + b1, 0.0) @ w2.T + b2
    assert out.shape == (N, 1)
    assert jnp.allclose(out, ref, atol=1e-5, rtol=1e-5)

    print("KERNEL_OK")
</pallas_src>

<mosaic_0001>
module attributes {stable_mosaic.version = 11 : i64} {
  func.func @mlp_kernel(%arg0: i32, %arg1: memref<1x128xf32, #tpu.memory_space<vmem>>, %arg2: memref<32x1xf32, #tpu.memory_space<vmem>>, %arg3: memref<32x1xf32, #tpu.memory_space<vmem>>, %arg4: memref<32x1xf32, #tpu.memory_space<vmem>>, %arg5: memref<1xf32, #tpu.memory_space<smem>>, %arg6: memref<1x128xf32, #tpu.memory_space<vmem>>) attributes {dimension_semantics = [#tpu.dimension_semantics<parallel>], iteration_bounds = array<i64: 1>, scalar_prefetch = 0 : i64, scratch_operands = 0 : i64, tpu.core_type = #tpu.core_type<tc>, window_params = [{transform_indices = @transform_0, window_bounds = array<i64: 1, 128>}, {pipeline_mode = #tpu.pipeline_mode<synchronous>, transform_indices = @transform_1, window_bounds = array<i64: 32, 1>}, {pipeline_mode = #tpu.pipeline_mode<synchronous>, transform_indices = @transform_2, window_bounds = array<i64: 32, 1>}, {pipeline_mode = #tpu.pipeline_mode<synchronous>, transform_indices = @transform_3, window_bounds = array<i64: 32, 1>}, {transform_indices = @transform_4, window_bounds = array<i64: 1>}, {transform_indices = @transform_5, window_bounds = array<i64: 1, 128>}]} {
    %c0 = arith.constant 0 : index
    %c0_0 = arith.constant 0 : index
    %0 = vector.load %arg1[%c0, %c0_0] : memref<1x128xf32, #tpu.memory_space<vmem>>, vector<1x128xf32>
    %c0_1 = arith.constant 0 : index
    %c0_2 = arith.constant 0 : index
    %1 = vector.load %arg2[%c0_1, %c0_2] : memref<32x1xf32, #tpu.memory_space<vmem>>, vector<32x1xf32>
    %c0_3 = arith.constant 0 : index
    %c0_4 = arith.constant 0 : index
    %2 = vector.load %arg3[%c0_3, %c0_4] : memref<32x1xf32, #tpu.memory_space<vmem>>, vector<32x1xf32>
    %c0_5 = arith.constant 0 : index
    %c0_6 = arith.constant 0 : index
    %3 = vector.load %arg4[%c0_5, %c0_6] : memref<32x1xf32, #tpu.memory_space<vmem>>, vector<32x1xf32>
    %4 = vector.broadcast %1 : vector<32x1xf32> to vector<32x128xf32>
    %5 = vector.broadcast %0 : vector<1x128xf32> to vector<32x128xf32>
    %6 = arith.mulf %4, %5 : vector<32x128xf32>
    %7 = vector.broadcast %2 : vector<32x1xf32> to vector<32x128xf32>
    %8 = arith.addf %6, %7 : vector<32x128xf32>
    %cst = arith.constant 0.000000e+00 : f32
    %9 = vector.broadcast %cst : f32 to vector<32x128xf32>
    %10 = arith.maximumf %8, %9 : vector<32x128xf32>
    %11 = vector.broadcast %3 : vector<32x1xf32> to vector<32x128xf32>
    %12 = arith.mulf %10, %11 : vector<32x128xf32>
    %cst_7 = arith.constant dense<0.000000e+00> : vector<128xf32>
    %13 = vector.multi_reduction <add>, %12, %cst_7 [0] : vector<32x128xf32> to vector<128xf32>
    %14 = vector.shape_cast %13 : vector<128xf32> to vector<1x128xf32>
    %c0_8 = arith.constant 0 : index
    %15 = memref.load %arg5[%c0_8] : memref<1xf32, #tpu.memory_space<smem>>
    %16 = vector.broadcast %15 : f32 to vector<1x128xf32>
    %17 = arith.addf %14, %16 : vector<1x128xf32>
    %c0_9 = arith.constant 0 : index
    %c0_10 = arith.constant 0 : index
    %18 = vector.load %arg6[%c0_9, %c0_10] : memref<1x128xf32, #tpu.memory_space<vmem>>, vector<1x128xf32>
    tpu.vector_store %arg6[%c0_9, %c0_10], %17 {strides = array<i32>} : memref<1x128xf32, #tpu.memory_space<vmem>>, vector<1x128xf32>,
    return
  }
  func.func @transform_0(%arg0: i32) -> (i32, i32) {
    %c0_i32 = arith.constant 0 : i32
    %c0_i32_0 = arith.constant 0 : i32
    return %c0_i32, %arg0 : i32, i32
  }
  func.func @transform_1(%arg0: i32) -> (i32, i32) {
    %c0_i32 = arith.constant 0 : i32
    %c0_i32_0 = arith.constant 0 : i32
    %c0_i32_1 = arith.constant 0 : i32
    return %c0_i32, %c0_i32_0 : i32, i32
  }
  func.func @transform_2(%arg0: i32) -> (i32, i32) {
    %c0_i32 = arith.constant 0 : i32
    %c0_i32_0 = arith.constant 0 : i32
    %c0_i32_1 = arith.constant 0 : i32
    return %c0_i32, %c0_i32_0 : i32, i32
  }
  func.func @transform_3(%arg0: i32) -> (i32, i32) {
    %c0_i32 = arith.constant 0 : i32
    %c0_i32_0 = arith.constant 0 : i32
    %c0_i32_1 = arith.constant 0 : i32
    return %c0_i32, %c0_i32_0 : i32, i32
  }
  func.func @transform_4(%arg0: i32) -> i32 {
    %c0_i32 = arith.constant 0 : i32
    %c0_i32_0 = arith.constant 0 : i32
    return %c0_i32 : i32
  }
  func.func @transform_5(%arg0: i32) -> (i32, i32) {
    %c0_i32 = arith.constant 0 : i32
    %c0_i32_0 = arith.constant 0 : i32
    return %c0_i32, %arg0 : i32, i32
  }
}

</mosaic_0001>

<llo_original>
// kernel: tpu_custom_call.1
$region0: #{tpu_custom_call.1}
  #allocation0 [shape = 'u32[]', space=smem, size = 0x4, offset = 0x4, fixed_abs, tag = 'smem constant byte address 0x4 - core index']
  #allocation1 [shape = 'u32[144,128]{1,0:T(1,128)}', space=vmem, size = 0x12000, scoped, tag = 'internal scratch']
  #allocation2 [shape = 'f32[1]{0:T(128)S(6)}', space=smem, size = 0x200, scoped, tag = 'scoped memory for tpu_custom_call.1']
  %s0 = inlined_call_operand.vmem [shape: f32[1,128], index: 0, kind: input, shape index: {}]
  %s1 = inlined_call_operand.vmem [shape: f32[32,1], index: 1, kind: input, shape index: {}]
  %s2 = inlined_call_operand.vmem [shape: f32[32,1], index: 2, kind: input, shape index: {}]
  %s3 = inlined_call_operand.vmem [shape: f32[32,1], index: 3, kind: input, shape index: {}]
  %s4 = inlined_call_operand.<no memory space> [shape: f32[1], index: 4, kind: input, shape index: {}]
  %s5 = inlined_call_operand.hbm [shape: f32[1,128], index: 5, kind: output, shape index: {}]
  %s6 = sld [smem:[#allocation0]]
  $region30: #{tpu_custom_call.1} parent=0
    _
  %s8 = ssub.s32 1, %s6
  %s9 = scalar_select 0, %s8, %s6
  %10 = sst [smem:[#allocation2]] %s4
  $region1: #{tpu_custom_call.1} parent=0
    #allocation3 [shape = 'u8[512]{0}', space=vmem, size = 0x400, scoped, tag = 'output window, operand 0, single buffered']
    #allocation4 [shape = 's32[1]{0}', space=sflag, size = 0x4, scoped, tag = 'scoped memory for tpu_custom_call.1']
    %11 = vsyncpa [#allocation4], 0
    // Predicated region
    $region2: #{tpu_custom_call.1} parent=1 // pred_check
      _
    $region3: #{tpu_custom_call.1} parent=1 // pred_check_branch
      %13 = sbr.rel (0) target = $region5
    $region4: #{tpu_custom_call.1} parent=1 // pred_region
      _
    $region5: #{tpu_custom_call.1} parent=1 // pred_fallthru
      _
    // Predicated region
    $region6: #{tpu_custom_call.1} parent=1 // pred_check
      _
    $region7: #{tpu_custom_call.1} parent=1 // pred_check_branch
      %15 = sbr.rel (0) target = $region9
    $region8: #{tpu_custom_call.1} parent=1 // pred_region
      _
    $region9: #{tpu_custom_call.1} parent=1 // pred_fallthru
      _
    // Predicated region
    $region10: #{tpu_custom_call.1} parent=1 // pred_check
      _
    $region11: #{tpu_custom_call.1} parent=1 // pred_check_branch
      %17 = sbr.rel (0) target = $region13
    $region12: #{tpu_custom_call.1} parent=1 // pred_region
      _
    $region13: #{tpu_custom_call.1} parent=1 // pred_fallthru
      _
    // Predicated region
    $region14: #{tpu_custom_call.1} parent=1 // pred_check
      _
    $region15: #{tpu_custom_call.1} parent=1 // pred_check_branch
      %19 = sbr.rel (0) target = $region17
    $region16: #{tpu_custom_call.1} parent=1 // pred_region
      _
    $region17: #{tpu_custom_call.1} parent=1 // pred_fallthru
      _
    // Predicated region
    $region18: #{tpu_custom_call.1} parent=1 // pred_check
      _
    $region19: #{tpu_custom_call.1} parent=1 // pred_check_branch
      %21 = sbr.rel (0) target = $region21
    $region20: #{tpu_custom_call.1} parent=1 // pred_region
      _
    $region21: #{tpu_custom_call.1} parent=1 // pred_fallthru
      _
    %v22 = vld [vmem:[%s0] sm:$0x1]
    %v23 = vld [vmem:[%s1] sm:$0xff]
    %v24 = vld [vmem:[%s1 + $0x8] sm:$0xff]
    %v25 = vld [vmem:[%s1 + $0x10] sm:$0xff]
    %v26 = vld [vmem:[%s1 + $0x18] sm:$0xff]
    %v27 = vld [vmem:[%s2] sm:$0xff]
    %v28 = vld [vmem:[%s2 + $0x8] sm:$0xff]
    %v29 = vld [vmem:[%s2 + $0x10] sm:$0xff]
    %v30 = vld [vmem:[%s2 + $0x18] sm:$0xff]
    %v31 = vld [vmem:[%s3] sm:$0xff]
    %v32 = vld [vmem:[%s3 + $0x8] sm:$0xff]
    %v33 = vld [vmem:[%s3 + $0x10] sm:$0xff]
    %v34 = vld [vmem:[%s3 + $0x18] sm:$0xff]
    %36 = vset.pattern.permute.xlu0 0
    %37 = vperm.xlu0 %36, %v23
    %v38 = vpop.permute.xlu0 %37
    %41 = vset.pattern.permute.xlu0 0
    %42 = vperm.xlu0 %41, %v24
    %v43 = vpop.permute.xlu0 %42
    %46 = vset.pattern.permute.xlu0 0
    %47 = vperm.xlu0 %46, %v25
    %v48 = vpop.permute.xlu0 %47
    %51 = vset.pattern.permute.xlu0 0
    %52 = vperm.xlu0 %51, %v26
    %v53 = vpop.permute.xlu0 %52
    %v56 = vlaneseq
    %v57 = vshrl.u32 %v56, 7
    %v58 = vsub.s32 0, %v57
    %v59 = vrot.slane %v22, %v58
    %v61 = vmul.f32 %v38, %v59
    %v62 = vmul.f32 %v43, %v59
    %v63 = vmul.f32 %v48, %v59
    %v64 = vmul.f32 %v53, %v59
    %66 = vset.pattern.permute.xlu0 0
    %67 = vperm.xlu0 %66, %v27
    %v68 = vpop.permute.xlu0 %67
    %71 = vset.pattern.permute.xlu0 0
    %72 = vperm.xlu0 %71, %v28
    %v73 = vpop.permute.xlu0 %72
    %76 = vset.pattern.permute.xlu0 0
    %77 = vperm.xlu0 %76, %v29
    %v78 = vpop.permute.xlu0 %77
    %81 = vset.pattern.permute.xlu0 0
    %82 = vperm.xlu0 %81, %v30
    %v83 = vpop.permute.xlu0 %82
    %v85 = vadd.f32 %v61, %v68
    %v86 = vadd.f32 %v62, %v73
    %v87 = vadd.f32 %v63, %v78
    %v88 = vadd.f32 %v64, %v83
    %v89 = vmax.f32 %v85, 0.0
    %v90 = vmax.f32 %v86, 0.0
    %v91 = vmax.f32 %v87, 0.0
    %v92 = vmax.f32 %v88, 0.0
    %94 = vset.pattern.permute.xlu0 0
    %95 = vperm.xlu0 %94, %v31
    %v96 = vpop.permute.xlu0 %95
    %99 = vset.pattern.permute.xlu0 0
    %100 = vperm.xlu0 %99, %v32
    %v101 = vpop.permute.xlu0 %100
    %104 = vset.pattern.permute.xlu0 0
    %105 = vperm.xlu0 %104, %v33
    %v106 = vpop.permute.xlu0 %105
    %109 = vset.pattern.permute.xlu0 0
    %110 = vperm.xlu0 %109, %v34
    %v111 = vpop.permute.xlu0 %110
    %v113 = vmul.f32 %v89, %v96
    %v114 = vmul.f32 %v90, %v101
    %v115 = vmul.f32 %v91, %v106
    %v116 = vmul.f32 %v92, %v111
    %v117 = vadd.f32 %v113, %v114
    %v118 = vadd.f32 %v117, %v115
    %v119 = vadd.f32 %v118, %v116
    %v120 = vrot.slane %v119, 4
    %v121 = vadd.f32 %v119, %v120
    %v122 = vrot.slane %v121, 2
    %v123 = vadd.f32 %v121, %v122
    %v124 = vrot.slane %v123, 1
    %v125 = vadd.f32 %v123, %v124
    %s126 = sld [smem:[#allocation2]]
    %v127 = vstv %s126
    %v128 = vadd.f32 %v125, %v127
    %129 = vst [vmem:[#allocation3] sm:$0x1] %v128
    // Predicated region
    $region22: #{tpu_custom_call.1} parent=1 // pred_check
      _
    $region23: #{tpu_custom_call.1} parent=1 // pred_check_branch
      %131 = sbr.rel (0) target = $region25
    $region24: #{tpu_custom_call.1} parent=1 // pred_region
      %s133 = ssub.s32 16, 16
      %134 = vsyncadd [#allocation4], %s133
      %s136 = sshll.u32 [#allocation3], 4
      %s137 = int_to_ptr.vmem [resolvable:$true] %s136
      %139 = dma.vmem_to_hbm [thread:$0]  %s137, 16, %s5, [#allocation4]
    $region25: #{tpu_custom_call.1} parent=1 // pred_fallthru
      _
    // Predicated region
    $region26: #{tpu_custom_call.1} parent=1 // pred_check
      _
    $region27: #{tpu_custom_call.1} parent=1 // pred_check_branch
      %141 = sbr.rel (0) target = $region29
    $region28: #{tpu_custom_call.1} parent=1 // pred_region
      %142 = dma.done [#allocation4], 16
    $region29: #{tpu_custom_call.1} parent=1 // pred_fallthru
      _
    %143 = vsyncpa [#allocation4], 1

</llo_original>
